<compile_context>
chip_gen: v6e
topology: v6e:2x2x1
jax: 0.10.0
libtpu: 0.0.40
codegen_flags: <defaults>
</compile_context>

<pallas_src>
import math

import jax
import jax.numpy as jnp
from jax import lax
from jax.experimental import pallas as pl
from jax.experimental.pallas import tpu as pltpu

_LANES = 128
_SUBLANES = 8
_ROW_BLOCK_ELEMS = _SUBLANES * _LANES     # 1024 f32 = one (8,128) chunk = 1 vreg
_STATIC_CHUNK_UNROLL = 16                 # <= 16 chunks: fully static tree-sum
_N_ACCS = 4                               # independent accumulators per stream


def _round_up(v, m):
    return ((v + m - 1) // m) * m


def _cdiv(a, b):
    return (a + b - 1) // b


def _tuning():
    """Per-generation (max_block_rows, input_vmem_budget, vmem_limit_bytes)."""
    vmem_bytes = None
    try:
        info = pltpu.get_tpu_info()
        for attr in ("vmem_capacity_bytes", "vmem_size_bytes", "vmem_bytes"):
            v = getattr(info, attr, None)
            if v:
                vmem_bytes = int(v)
                break
    except Exception:
        pass
    if vmem_bytes is None:
        vmem_bytes = 64 << 20                 # conservative (v7x-sized VMEM)
    if vmem_bytes >= (96 << 20):              # v5e / v6e: 128 MiB VMEM
        return 2048, 32 << 20, 64 << 20
    return 1024, 16 << 20, 32 << 20           # v7x: 64 MiB VMEM


def _to_slab(x, pad_value):
    """Flatten to f32 and view as a lane-dense (rows, 128) slab, rows % 8 == 0.

    Padding uses the stream's neutral value (0 for squared-diff streams,
    1 for log streams), so padded elements contribute nothing and the kernel
    never needs an element mask.
    """
    # TODO(synk): when numel % 1024 != 0 the concatenate below is a full-tensor
    # HBM copy; for large oddly-sized tensors an in-kernel element-granular
    # tail mask would avoid that extra read+write.
    x = jnp.asarray(x, jnp.float32).reshape(-1)
    n = x.shape[0]
    padded = _round_up(max(n, 1), _ROW_BLOCK_ELEMS)
    if padded != n:
        x = jnp.concatenate([x, jnp.full((padded - n,), pad_value, jnp.float32)])
    return x.reshape(padded // _LANES, _LANES)


# ------------------------------ kernel pieces ------------------------------ #

def _chunk_start(j):
    start = j * _SUBLANES
    if not isinstance(j, int):
        start = pl.multiple_of(start, _SUBLANES)
    return start


def _reduce_chunks(make_chunk, n_chunks):
    """sum_{j < n_chunks} make_chunk(j); make_chunk(j) -> (8,128) f32 (1 vreg).

    Chunked accumulation keeps live vregs to a few accumulators per stream
    (no whole-block materialization, no long serial add chain).
    """
    if n_chunks <= 0:
        return jnp.zeros((_SUBLANES, _LANES), jnp.float32)

    if n_chunks <= _STATIC_CHUNK_UNROLL:
        vals = [make_chunk(j) for j in range(n_chunks)]
        while len(vals) > 1:                                  # pairwise tree-sum
            nxt = [vals[k] + vals[k + 1] for k in range(0, len(vals) - 1, 2)]
            if len(vals) % 2:
                nxt.append(vals[-1])
            vals = nxt
        return vals[0]

    n_acc = min(_N_ACCS, n_chunks)
    n_groups = n_chunks // n_acc
    rem = n_chunks - n_groups * n_acc

    def body(g, accs):
        base = g * n_acc
        return tuple(acc + make_chunk(base + a) for a, acc in enumerate(accs))

    init = tuple(jnp.zeros((_SUBLANES, _LANES), jnp.float32) for _ in range(n_acc))
    accs = list(lax.fori_loop(0, n_groups, body, init, unroll=4))
    for r in range(rem):
        accs[r] = accs[r] + make_chunk(n_groups * n_acc + r)
    total = accs[0]
    for a in accs[1:]:
        total = total + a
    return total


def _emit_stream(i, grid_blocks, rows, brows, make_chunk, write):
    """Per-grid-step partial reduction of one (rows,128) stream tiled in
    (brows,128) blocks.  Short streams / partial last blocks are gated with
    pl.when so the hot path is unmasked and no wasted work is issued."""
    nblk = _cdiv(rows, brows)
    full_chunks = brows // _SUBLANES
    tail_chunks = (rows - (nblk - 1) * brows) // _SUBLANES
    last = nblk - 1

    def do_full():
        write(_reduce_chunks(make_chunk, full_chunks))

    def do_tail():
        write(_reduce_chunks(make_chunk, tail_chunks))

    if tail_chunks == full_chunks:
        if nblk == grid_blocks:
            do_full()                               # always a full block
        else:
            pl.when(i < nblk)(do_full)              # skip past stream extent
    else:
        if last > 0:
            pl.when(i < last)(do_full)              # interior: unmasked fast path
        if nblk == grid_blocks and last == 0:
            do_tail()
        else:
            pl.when(i == last)(do_tail)             # boundary: fewer chunks only


def _make_fused_kernel(grid_blocks, pair_meta, log_meta):
    """pair_meta / log_meta: per-stream (rows, block_rows) static ints."""
    n_pairs = len(pair_meta)
    n_logs = len(log_meta)
    n_in = 2 * n_pairs + n_logs
    n_out_cols = (n_pairs + (1 if n_logs else 0)) * _LANES

    def kernel(*refs):
        in_refs = refs[:n_in]
        out_ref = refs[n_in]
        i = pl.program_id(0)

        # One packed lane-dense partial block per grid step:
        #   lanes [p*128,(p+1)*128) -> pair p squared-diff partial
        #   last 128 lanes          -> combined sum(log(likelihoods)) partial
        out_ref[...] = jnp.zeros((_SUBLANES, n_out_cols), jnp.float32)

        # Squared-difference streams.
        for p, (rows, brows) in enumerate(pair_meta):
            a_ref = in_refs[2 * p]
            b_ref = in_refs[2 * p + 1]
            c0 = p * _LANES

            def make_chunk(j, a_ref=a_ref, b_ref=b_ref):
                s = _chunk_start(j)
                d = a_ref[pl.ds(s, _SUBLANES), :] - b_ref[pl.ds(s, _SUBLANES), :]
                return d * d

            def write(partial, c0=c0):
                out_ref[:, c0:c0 + _LANES] = partial

            _emit_stream(i, grid_blocks, rows, brows, make_chunk, write)

        # log-likelihood streams -> one shared partial column.  Each stream is
        # gated to its own extent, so the single-slot EUP only sees real data
        # (important on v6e/v7x where log can become the binding unit).
        if n_logs:
            log_c0 = n_pairs * _LANES
            for q, (rows, brows) in enumerate(log_meta):
                l_ref = in_refs[2 * n_pairs + q]

                def make_chunk(j, l_ref=l_ref):
                    s = _chunk_start(j)
                    return jnp.log(l_ref[pl.ds(s, _SUBLANES), :])

                def accum(partial, c0=log_c0):
                    out_ref[:, c0:c0 + _LANES] = (
                        out_ref[:, c0:c0 + _LANES] + partial)

                _emit_stream(i, grid_blocks, rows, brows, make_chunk, accum)

    return kernel


# ------------------------------ fused wrapper ------------------------------ #

def _fused_loss_sums(x1_hat, target1, x2_hat, target2, likelihoods,
                     max_block_rows=None):
    """Returns (sum((x1-t1)^2), sum((x2-t2)^2), sum(log(all likelihoods)))."""
    tuned_rows, input_budget, vmem_limit = _tuning()
    if max_block_rows is None:
        max_block_rows = tuned_rows

    pair_slabs = [(_to_slab(x1_hat, 0.0), _to_slab(target1, 0.0)),
                  (_to_slab(x2_hat, 0.0), _to_slab(target2, 0.0))]
    log_slabs = [_to_slab(l, 1.0) for l in likelihoods]

    n_streams = 2 * len(pair_slabs) + len(log_slabs)
    # Largest block that fits the double-buffered input VMEM budget.
    budget_rows = input_budget // (n_streams * 2 * _LANES * 4)
    cap = max(_SUBLANES,
              min(max_block_rows, (budget_rows // _SUBLANES) * _SUBLANES))

    pair_meta = [(a.shape[0], min(cap, a.shape[0])) for a, _ in pair_slabs]
    log_meta = [(s.shape[0], min(cap, s.shape[0])) for s in log_slabs]
    grid_blocks = max(_cdiv(r, b) for r, b in pair_meta + log_meta)

    def _in_spec(rows, brows):
        nblk = _cdiv(rows, brows)
        if nblk == grid_blocks:
            return pl.BlockSpec((brows, _LANES), lambda i: (i, 0))
        last = nblk - 1
        # Clamp: steps past this stream's extent re-use (and don't re-fetch)
        # its last block; the in-kernel pl.when gate skips the work entirely.
        return pl.BlockSpec((brows, _LANES),
                            lambda i, _last=last: (jnp.minimum(i, _last), 0))

    inputs, in_specs = [], []
    for (a, b), (rows, brows) in zip(pair_slabs, pair_meta):
        inputs += [a, b]
        in_specs += [_in_spec(rows, brows), _in_spec(rows, brows)]
    for s, (rows, brows) in zip(log_slabs, log_meta):
        inputs.append(s)
        in_specs.append(_in_spec(rows, brows))

    n_out = len(pair_slabs) + (1 if log_slabs else 0)
    out_cols = n_out * _LANES
    out_shape = jax.ShapeDtypeStruct((grid_blocks * _SUBLANES, out_cols),
                                     jnp.float32)
    out_spec = pl.BlockSpec((_SUBLANES, out_cols), lambda i: (i, 0))

    kernel = _make_fused_kernel(grid_blocks, pair_meta, log_meta)

    outs = pl.pallas_call(
        kernel,
        out_shape=out_shape,
        grid_spec=pltpu.PrefetchScalarGridSpec(
            num_scalar_prefetch=0,
            grid=(grid_blocks,),
            in_specs=in_specs,
            out_specs=out_spec,
        ),
        compiler_params=pltpu.CompilerParams(
            # Each step writes its own partial block -> truly parallel grid
            # (lets v7x shard across both TensorCores).
            dimension_semantics=("parallel",),
            vmem_limit_bytes=vmem_limit,
        ),
    )(*inputs)

    ssd1 = jnp.sum(outs[:, 0:_LANES])
    ssd2 = jnp.sum(outs[:, _LANES:2 * _LANES])
    if log_slabs:
        log_sum = jnp.sum(outs[:, 2 * _LANES:3 * _LANES])
    else:
        log_sum = jnp.float32(0.0)
    return ssd1, ssd2, log_sum


# ------------------------------ loss wrapper ------------------------------- #

def rate_distortion_loss(output, target1, target2, lmbda=0.01,
                         max_block_rows=None):
    """JAX/Pallas equivalent of RateDistortionLoss.forward."""
    N, _, H, W = target1.shape
    num_pixels = N * H * W

    likelihoods = list(output["likelihoods"].values())
    ssd1, ssd2, log_sum = _fused_loss_sums(
        output["x1_hat"], target1, output["x2_hat"], target2, likelihoods,
        max_block_rows=max_block_rows)

    mse1 = ssd1 / jnp.float32(target1.size)
    mse2 = ssd2 / jnp.float32(target2.size)

    out = {}
    # sum_k( sum(log l_k) ) / (-ln2 * num_pixels)
    out["bpp_loss"] = log_sum / (-math.log(2) * num_pixels)
    out["mse_loss"] = mse1 + mse2
    out["loss"] = lmbda * 255.0 ** 2 * out["mse_loss"] + out["bpp_loss"]
    out["psnr1"] = 10.0 * jnp.log10(1.0 / mse1)
    out["psnr2"] = 10.0 * jnp.log10(1.0 / mse2)
    return out


# ----------------------------- reference check ----------------------------- #

def _reference(output, target1, target2, lmbda=0.01):
    N, _, H, W = target1.shape
    num_pixels = N * H * W
    bpp = sum(
        jnp.sum(jnp.log(l)) / (-math.log(2) * num_pixels)
        for l in output["likelihoods"].values()
    )
    mse1 = jnp.mean((output["x1_hat"] - target1) ** 2)
    mse2 = jnp.mean((output["x2_hat"] - target2) ** 2)
    return {
        "bpp_loss": bpp,
        "mse_loss": mse1 + mse2,
        "loss": lmbda * 255.0 ** 2 * (mse1 + mse2) + bpp,
        "psnr1": 10.0 * jnp.log10(1.0 / mse1),
        "psnr2": 10.0 * jnp.log10(1.0 / mse2),
    }


def _make_inputs(key, N, C, H, W):
    k1, k2, k3, k4, k5, k6 = jax.random.split(key, 6)
    target1 = jax.random.uniform(k1, (N, C, H, W), jnp.float32)
    target2 = jax.random.uniform(k2, (N, C, H, W), jnp.float32)
    x1_hat = jax.random.uniform(k3, (N, C, H, W), jnp.float32)
    x2_hat = jax.random.uniform(k4, (N, C, H, W), jnp.float32)
    # Likelihoods must be strictly positive (probabilities in (0, 1]).
    likelihoods = {
        "y": jax.random.uniform(k5, (N, 8, max(H // 4, 1), max(W // 4, 1)),
                                jnp.float32, minval=1e-3, maxval=1.0),
        "z": jax.random.uniform(k6, (N, 4, max(H // 8, 1), max(W // 8, 1)),
                                jnp.float32, minval=1e-3, maxval=1.0),
    }
    output = {"x1_hat": x1_hat, "x2_hat": x2_hat, "likelihoods": likelihoods}
    return output, target1, target2


def _check(tag, output, target1, target2, max_block_rows=None):
    result = rate_distortion_loss(output, target1, target2, lmbda=0.01,
                                  max_block_rows=max_block_rows)
    result = jax.tree_util.tree_map(jax.block_until_ready, result)
    ref = _reference(output, target1, target2, lmbda=0.01)
    for name in ("bpp_loss", "mse_loss", "loss", "psnr1", "psnr2"):
        assert jnp.allclose(result[name], ref[name], rtol=1e-4, atol=1e-5), \
            f"{tag}:{name} got {result[name]} expected {ref[name]}"


if __name__ == "__main__":
    key = jax.random.PRNGKey(0)
    ka, kb, kc = jax.random.split(key, 3)

    # A) small, single-block path (static chunk unroll).
    out_a, t1a, t2a = _make_inputs(ka, 2, 3, 16, 16)
    _check("A", out_a, t1a, t2a)

    # B) multi-block grid with partial tail block, clamped index maps and
    #    pl.when-gated short (likelihood) streams.
    out_b, t1b, t2b = _make_inputs(kb, 2, 3, 16, 24)
    _check("B", out_b, t1b, t2b, max_block_rows=16)

    # C) enough rows per block to exercise the fori_loop(unroll=4)
    #    multi-accumulator reduction path.
    out_c, t1c, t2c = _make_inputs(kc, 2, 3, 64, 64)
    _check("C", out_c, t1c, t2c)

    print("KERNEL_OK")
</pallas_src>

<mosaic_0001>
module attributes {stable_mosaic.version = 11 : i64} {
  func.func @kernel(%arg0: i32, %arg1: memref<16x128xf32, #tpu.memory_space<vmem>>, %arg2: memref<16x128xf32, #tpu.memory_space<vmem>>, %arg3: memref<16x128xf32, #tpu.memory_space<vmem>>, %arg4: memref<16x128xf32, #tpu.memory_space<vmem>>, %arg5: memref<8x128xf32, #tpu.memory_space<vmem>>, %arg6: memref<8x128xf32, #tpu.memory_space<vmem>>, %arg7: memref<8x384xf32, #tpu.memory_space<vmem>>) attributes {dimension_semantics = [#tpu.dimension_semantics<parallel>], iteration_bounds = array<i64: 1>, scalar_prefetch = 0 : i64, scratch_operands = 0 : i64, tpu.core_type = #tpu.core_type<tc>, window_params = [{transform_indices = @transform_0, window_bounds = array<i64: 16, 128>}, {transform_indices = @transform_1, window_bounds = array<i64: 16, 128>}, {transform_indices = @transform_2, window_bounds = array<i64: 16, 128>}, {transform_indices = @transform_3, window_bounds = array<i64: 16, 128>}, {transform_indices = @transform_4, window_bounds = array<i64: 8, 128>}, {transform_indices = @transform_5, window_bounds = array<i64: 8, 128>}, {transform_indices = @transform_6, window_bounds = array<i64: 8, 384>}]} {
    %cst = arith.constant 0.000000e+00 : f32
    %0 = vector.broadcast %cst : f32 to vector<8x384xf32>
    %c0 = arith.constant 0 : index
    %c0_0 = arith.constant 0 : index
    %1 = vector.load %arg7[%c0, %c0_0] : memref<8x384xf32, #tpu.memory_space<vmem>>, vector<8x384xf32>
    tpu.vector_store %arg7[%c0, %c0_0], %0 {strides = array<i32>} : memref<8x384xf32, #tpu.memory_space<vmem>>, vector<8x384xf32>,
    %c0_1 = arith.constant 0 : index
    %c0_2 = arith.constant 0 : index
    %2 = vector.load %arg1[%c0_1, %c0_2] : memref<16x128xf32, #tpu.memory_space<vmem>>, vector<8x128xf32>
    %c0_3 = arith.constant 0 : index
    %c0_4 = arith.constant 0 : index
    %3 = vector.load %arg2[%c0_3, %c0_4] : memref<16x128xf32, #tpu.memory_space<vmem>>, vector<8x128xf32>
    %4 = arith.subf %2, %3 : vector<8x128xf32>
    %5 = arith.mulf %4, %4 : vector<8x128xf32>
    %c8 = arith.constant 8 : index
    %c0_5 = arith.constant 0 : index
    %6 = vector.load %arg1[%c8, %c0_5] : memref<16x128xf32, #tpu.memory_space<vmem>>, vector<8x128xf32>
    %c8_6 = arith.constant 8 : index
    %c0_7 = arith.constant 0 : index
    %7 = vector.load %arg2[%c8_6, %c0_7] : memref<16x128xf32, #tpu.memory_space<vmem>>, vector<8x128xf32>
    %8 = arith.subf %6, %7 : vector<8x128xf32>
    %9 = arith.mulf %8, %8 : vector<8x128xf32>
    %10 = arith.addf %5, %9 : vector<8x128xf32>
    %c0_8 = arith.constant 0 : index
    %c0_9 = arith.constant 0 : index
    %11 = vector.load %arg7[%c0_8, %c0_9] : memref<8x384xf32, #tpu.memory_space<vmem>>, vector<8x128xf32>
    tpu.vector_store %arg7[%c0_8, %c0_9], %10 {strides = array<i32>} : memref<8x384xf32, #tpu.memory_space<vmem>>, vector<8x128xf32>,
    %c0_10 = arith.constant 0 : index
    %c0_11 = arith.constant 0 : index
    %12 = vector.load %arg3[%c0_10, %c0_11] : memref<16x128xf32, #tpu.memory_space<vmem>>, vector<8x128xf32>
    %c0_12 = arith.constant 0 : index
    %c0_13 = arith.constant 0 : index
    %13 = vector.load %arg4[%c0_12, %c0_13] : memref<16x128xf32, #tpu.memory_space<vmem>>, vector<8x128xf32>
    %14 = arith.subf %12, %13 : vector<8x128xf32>
    %15 = arith.mulf %14, %14 : vector<8x128xf32>
    %c8_14 = arith.constant 8 : index
    %c0_15 = arith.constant 0 : index
    %16 = vector.load %arg3[%c8_14, %c0_15] : memref<16x128xf32, #tpu.memory_space<vmem>>, vector<8x128xf32>
    %c8_16 = arith.constant 8 : index
    %c0_17 = arith.constant 0 : index
    %17 = vector.load %arg4[%c8_16, %c0_17] : memref<16x128xf32, #tpu.memory_space<vmem>>, vector<8x128xf32>
    %18 = arith.subf %16, %17 : vector<8x128xf32>
    %19 = arith.mulf %18, %18 : vector<8x128xf32>
    %20 = arith.addf %15, %19 : vector<8x128xf32>
    %c0_18 = arith.constant 0 : index
    %c128 = arith.constant 128 : index
    %21 = vector.load %arg7[%c0_18, %c128] : memref<8x384xf32, #tpu.memory_space<vmem>>, vector<8x128xf32>
    tpu.vector_store %arg7[%c0_18, %c128], %20 {strides = array<i32>} : memref<8x384xf32, #tpu.memory_space<vmem>>, vector<8x128xf32>,
    %c0_19 = arith.constant 0 : index
    %c0_20 = arith.constant 0 : index
    %22 = vector.load %arg5[%c0_19, %c0_20] : memref<8x128xf32, #tpu.memory_space<vmem>>, vector<8x128xf32>
    %23 = math.log %22 : vector<8x128xf32>
    %c0_21 = arith.constant 0 : index
    %c256 = arith.constant 256 : index
    %24 = vector.load %arg7[%c0_21, %c256] : memref<8x384xf32, #tpu.memory_space<vmem>>, vector<8x128xf32>
    %25 = arith.addf %24, %23 : vector<8x128xf32>
    %c0_22 = arith.constant 0 : index
    %c256_23 = arith.constant 256 : index
    %26 = vector.load %arg7[%c0_22, %c256_23] : memref<8x384xf32, #tpu.memory_space<vmem>>, vector<8x128xf32>
    tpu.vector_store %arg7[%c0_22, %c256_23], %25 {strides = array<i32>} : memref<8x384xf32, #tpu.memory_space<vmem>>, vector<8x128xf32>,
    %c0_24 = arith.constant 0 : index
    %c0_25 = arith.constant 0 : index
    %27 = vector.load %arg6[%c0_24, %c0_25] : memref<8x128xf32, #tpu.memory_space<vmem>>, vector<8x128xf32>
    %28 = math.log %27 : vector<8x128xf32>
    %c0_26 = arith.constant 0 : index
    %c256_27 = arith.constant 256 : index
    %29 = vector.load %arg7[%c0_26, %c256_27] : memref<8x384xf32, #tpu.memory_space<vmem>>, vector<8x128xf32>
    %30 = arith.addf %29, %28 : vector<8x128xf32>
    %c0_28 = arith.constant 0 : index
    %c256_29 = arith.constant 256 : index
    %31 = vector.load %arg7[%c0_28, %c256_29] : memref<8x384xf32, #tpu.memory_space<vmem>>, vector<8x128xf32>
    tpu.vector_store %arg7[%c0_28, %c256_29], %30 {strides = array<i32>} : memref<8x384xf32, #tpu.memory_space<vmem>>, vector<8x128xf32>,
    return
  }
  func.func @transform_0(%arg0: i32) -> (i32, i32) {
    %c0_i32 = arith.constant 0 : i32
    %c0_i32_0 = arith.constant 0 : i32
    return %arg0, %c0_i32 : i32, i32
  }
  func.func @transform_1(%arg0: i32) -> (i32, i32) {
    %c0_i32 = arith.constant 0 : i32
    %c0_i32_0 = arith.constant 0 : i32
    return %arg0, %c0_i32 : i32, i32
  }
  func.func @transform_2(%arg0: i32) -> (i32, i32) {
    %c0_i32 = arith.constant 0 : i32
    %c0_i32_0 = arith.constant 0 : i32
    return %arg0, %c0_i32 : i32, i32
  }
  func.func @transform_3(%arg0: i32) -> (i32, i32) {
    %c0_i32 = arith.constant 0 : i32
    %c0_i32_0 = arith.constant 0 : i32
    return %arg0, %c0_i32 : i32, i32
  }
  func.func @transform_4(%arg0: i32) -> (i32, i32) {
    %c0_i32 = arith.constant 0 : i32
    %c0_i32_0 = arith.constant 0 : i32
    return %arg0, %c0_i32 : i32, i32
  }
  func.func @transform_5(%arg0: i32) -> (i32, i32) {
    %c0_i32 = arith.constant 0 : i32
    %c0_i32_0 = arith.constant 0 : i32
    return %arg0, %c0_i32 : i32, i32
  }
  func.func @transform_6(%arg0: i32) -> (i32, i32) {
    %c0_i32 = arith.constant 0 : i32
    %c0_i32_0 = arith.constant 0 : i32
    return %arg0, %c0_i32 : i32, i32
  }
}

</mosaic_0001>

<llo_original>
// kernel: tpu_custom_call.1
$region0: #{tpu_custom_call.1}
  #allocation0 [shape = 'u32[]', space=smem, size = 0x4, offset = 0x4, fixed_abs, tag = 'smem constant byte address 0x4 - core index']
  #allocation1 [shape = 'u32[144,128]{1,0:T(1,128)}', space=vmem, size = 0x12000, scoped, tag = 'internal scratch']
  %s0 = inlined_call_operand.hbm [shape: f32[16,128], index: 0, kind: input, shape index: {}]
  %s1 = inlined_call_operand.hbm [shape: f32[16,128], index: 1, kind: input, shape index: {}]
  %s2 = inlined_call_operand.hbm [shape: f32[16,128], index: 2, kind: input, shape index: {}]
  %s3 = inlined_call_operand.hbm [shape: f32[16,128], index: 3, kind: input, shape index: {}]
  %s4 = inlined_call_operand.hbm [shape: f32[8,128], index: 4, kind: input, shape index: {}]
  %s5 = inlined_call_operand.vmem [shape: f32[8,128], index: 5, kind: input, shape index: {}]
  %s6 = inlined_call_operand.hbm [shape: f32[8,384], index: 6, kind: output, shape index: {}]
  %s7 = sld [smem:[#allocation0]]
  $region54: #{tpu_custom_call.1} parent=0
    _
  %s9 = ssub.s32 1, %s7
  %s10 = scalar_select 0, %s9, %s7
  $region1: #{tpu_custom_call.1} parent=0
    #allocation2 [shape = 'u8[8192]{0}', space=vmem, size = 0x2000, scoped, tag = 'input window, operand 0, single buffered']
    #allocation3 [shape = 's32[1]{0}', space=sflag, size = 0x4, scoped, tag = 'scoped memory for tpu_custom_call.1']
    #allocation4 [shape = 's32[1]{0}', space=sflag, size = 0x4, scoped, tag = 'scoped memory for tpu_custom_call.1']
    #allocation5 [shape = 'u8[8192]{0}', space=vmem, size = 0x2000, scoped, tag = 'input window, operand 1, single buffered']
    #allocation6 [shape = 's32[1]{0}', space=sflag, size = 0x4, scoped, tag = 'scoped memory for tpu_custom_call.1']
    #allocation7 [shape = 'u8[8192]{0}', space=vmem, size = 0x2000, scoped, tag = 'input window, operand 2, single buffered']
    #allocation8 [shape = 'u8[8192]{0}', space=vmem, size = 0x2000, scoped, tag = 'input window, operand 3, single buffered']
    #allocation9 [shape = 's32[1]{0}', space=sflag, size = 0x4, scoped, tag = 'scoped memory for tpu_custom_call.1']
    #allocation10 [shape = 'u8[4096]{0}', space=vmem, size = 0x1000, scoped, tag = 'input window, operand 4, single buffered']
    #allocation11 [shape = 'u8[12288]{0}', space=vmem, size = 0x3000, scoped, tag = 'output window, operand 0, single buffered']
    %11 = vsyncpa [#allocation3], 0
    %12 = vsyncpa [#allocation6], 0
    %13 = vsyncpa [#allocation9], 0
    %14 = vsyncpa [#allocation4], 0
    // Predicated region
    $region2: #{tpu_custom_call.1} parent=1 // pred_check
      _
    $region3: #{tpu_custom_call.1} parent=1 // pred_check_branch
      %16 = sbr.rel (0) target = $region5
    $region4: #{tpu_custom_call.1} parent=1 // pred_region
      %s18 = ssub.s32 256, 256
      %19 = vsyncadd [#allocation3], %s18
      %s20 = sshll.u32 [#allocation2], 4
      %s21 = int_to_ptr.vmem [resolvable:$true] %s20
      %26 = dma.hbm_to_vmem [thread:$0]  %s0, 256, %s21, [#allocation3], 128, 128, 8
    $region5: #{tpu_custom_call.1} parent=1 // pred_fallthru
      _
    // Predicated region
    $region6: #{tpu_custom_call.1} parent=1 // pred_check
      _
    $region7: #{tpu_custom_call.1} parent=1 // pred_check_branch
      %28 = sbr.rel (0) target = $region9
    $region8: #{tpu_custom_call.1} parent=1 // pred_region
      %s30 = ssub.s32 256, 256
      %31 = vsyncadd [#allocation6], %s30
      %s32 = sshll.u32 [#allocation5], 4
      %s33 = int_to_ptr.vmem [resolvable:$true] %s32
      %38 = dma.hbm_to_vmem [thread:$0]  %s1, 256, %s33, [#allocation6], 128, 128, 8
    $region9: #{tpu_custom_call.1} parent=1 // pred_fallthru
      _
    // Predicated region
    $region10: #{tpu_custom_call.1} parent=1 // pred_check
      _
    $region11: #{tpu_custom_call.1} parent=1 // pred_check_branch
      %40 = sbr.rel (0) target = $region13
    $region12: #{tpu_custom_call.1} parent=1 // pred_region
      %s42 = ssub.s32 256, 256
      %43 = vsyncadd [#allocation6], %s42
      %s44 = sshll.u32 [#allocation7], 4
      %s45 = int_to_ptr.vmem [resolvable:$true] %s44
      %50 = dma.hbm_to_vmem [thread:$0]  %s2, 256, %s45, [#allocation6], 128, 128, 8
    $region13: #{tpu_custom_call.1} parent=1 // pred_fallthru
      _
    // Predicated region
    $region14: #{tpu_custom_call.1} parent=1 // pred_check
      _
    $region15: #{tpu_custom_call.1} parent=1 // pred_check_branch
      %52 = sbr.rel (0) target = $region17
    $region16: #{tpu_custom_call.1} parent=1 // pred_region
      %s54 = ssub.s32 256, 256
      %55 = vsyncadd [#allocation9], %s54
      %s56 = sshll.u32 [#allocation8], 4
      %s57 = int_to_ptr.vmem [resolvable:$true] %s56
      %62 = dma.hbm_to_vmem [thread:$0]  %s3, 256, %s57, [#allocation9], 128, 128, 8
    $region17: #{tpu_custom_call.1} parent=1 // pred_fallthru
      _
    // Predicated region
    $region18: #{tpu_custom_call.1} parent=1 // pred_check
      _
    $region19: #{tpu_custom_call.1} parent=1 // pred_check_branch
      %64 = sbr.rel (0) target = $region21
    $region20: #{tpu_custom_call.1} parent=1 // pred_region
      %s66 = ssub.s32 128, 128
      %67 = vsyncadd [#allocation9], %s66
      %s69 = sshll.u32 [#allocation10], 4
      %s70 = int_to_ptr.vmem [resolvable:$true] %s69
      %72 = dma.hbm_to_vmem [thread:$0]  %s4, 128, %s70, [#allocation9]
    $region21: #{tpu_custom_call.1} parent=1 // pred_fallthru
      _
    // Predicated region
    $region22: #{tpu_custom_call.1} parent=1 // pred_check
      _
    $region23: #{tpu_custom_call.1} parent=1 // pred_check_branch
      %74 = sbr.rel (0) target = $region25
    $region24: #{tpu_custom_call.1} parent=1 // pred_region
      _
    $region25: #{tpu_custom_call.1} parent=1 // pred_fallthru
      _
    // Predicated region
    $region26: #{tpu_custom_call.1} parent=1 // pred_check
      _
    $region27: #{tpu_custom_call.1} parent=1 // pred_check_branch
      %76 = sbr.rel (0) target = $region29
    $region28: #{tpu_custom_call.1} parent=1 // pred_region
      %77 = dma.done [#allocation3], 256
    $region29: #{tpu_custom_call.1} parent=1 // pred_fallthru
      _
    // Predicated region
    $region30: #{tpu_custom_call.1} parent=1 // pred_check
      _
    $region31: #{tpu_custom_call.1} parent=1 // pred_check_branch
      %79 = sbr.rel (0) target = $region33
    $region32: #{tpu_custom_call.1} parent=1 // pred_region
      %80 = dma.done [#allocation6], 256
    $region33: #{tpu_custom_call.1} parent=1 // pred_fallthru
      _
    // Predicated region
    $region34: #{tpu_custom_call.1} parent=1 // pred_check
      _
    $region35: #{tpu_custom_call.1} parent=1 // pred_check_branch
      %82 = sbr.rel (0) target = $region37
    $region36: #{tpu_custom_call.1} parent=1 // pred_region
      %83 = dma.done [#allocation6], 256
    $region37: #{tpu_custom_call.1} parent=1 // pred_fallthru
      _
    // Predicated region
    $region38: #{tpu_custom_call.1} parent=1 // pred_check
      _
    $region39: #{tpu_custom_call.1} parent=1 // pred_check_branch
      %85 = sbr.rel (0) target = $region41
    $region40: #{tpu_custom_call.1} parent=1 // pred_region
      %86 = dma.done [#allocation9], 256
    $region41: #{tpu_custom_call.1} parent=1 // pred_fallthru
      _
    // Predicated region
    $region42: #{tpu_custom_call.1} parent=1 // pred_check
      _
    $region43: #{tpu_custom_call.1} parent=1 // pred_check_branch
      %88 = sbr.rel (0) target = $region45
    $region44: #{tpu_custom_call.1} parent=1 // pred_region
      %89 = dma.done [#allocation9], 128
    $region45: #{tpu_custom_call.1} parent=1 // pred_fallthru
      _
    %90 = vst [vmem:[#allocation11] sm:$0xff] 0.0
    %91 = vst [vmem:[#allocation11 + $0x8] sm:$0xff] 0.0
    %92 = vst [vmem:[#allocation11 + $0x10] sm:$0xff] 0.0
    %v93 = vld [vmem:[#allocation2] sm:$0xff]
    %v94 = vld [vmem:[#allocation5] sm:$0xff]
    %v95 = vsub.f32 %v93, %v94
    %v96 = vmul.f32 %v95, %v95
    %v97 = vld [vmem:[#allocation2 + $0x8] sm:$0xff]
    %v98 = vld [vmem:[#allocation5 + $0x8] sm:$0xff]
    %v99 = vsub.f32 %v97, %v98
    %v100 = vmul.f32 %v99, %v99
    %v101 = vadd.f32 %v96, %v100
    %102 = vst [vmem:[#allocation11] sm:$0xff] %v101
    %v103 = vld [vmem:[#allocation7] sm:$0xff]
    %v104 = vld [vmem:[#allocation8] sm:$0xff]
    %v105 = vsub.f32 %v103, %v104
    %v106 = vmul.f32 %v105, %v105
    %v107 = vld [vmem:[#allocation7 + $0x8] sm:$0xff]
    %v108 = vld [vmem:[#allocation8 + $0x8] sm:$0xff]
    %v109 = vsub.f32 %v107, %v108
    %v110 = vmul.f32 %v109, %v109
    %v111 = vadd.f32 %v106, %v110
    %112 = vst [vmem:[#allocation11 + $0x8] sm:$0xff] %v111
    %v113 = vld [vmem:[#allocation10] sm:$0xff]
    %v114 = vlog2.pop %v113
    %v115 = vmul.f32 %v114, 0.6931472
    %v116 = vld [vmem:[#allocation11 + $0x10] sm:$0xff]
    %v117 = vadd.f32 %v116, %v115
    %118 = vst [vmem:[#allocation11 + $0x10] sm:$0xff] %v117
    %v119 = vld [vmem:[%s5] sm:$0xff]
    %v120 = vlog2.pop %v119
    %v121 = vmul.f32 %v120, 0.6931472
    %v122 = vld [vmem:[#allocation11 + $0x10] sm:$0xff]
    %v123 = vadd.f32 %v122, %v121
    %124 = vst [vmem:[#allocation11 + $0x10] sm:$0xff] %v123
    // Predicated region
    $region46: #{tpu_custom_call.1} parent=1 // pred_check
      _
    $region47: #{tpu_custom_call.1} parent=1 // pred_check_branch
      %126 = sbr.rel (0) target = $region49
    $region48: #{tpu_custom_call.1} parent=1 // pred_region
      %s128 = ssub.s32 384, 384
      %129 = vsyncadd [#allocation4], %s128
      %s131 = sshll.u32 [#allocation11], 4
      %s132 = int_to_ptr.vmem [resolvable:$true] %s131
      %134 = dma.vmem_to_hbm [thread:$0]  %s132, 384, %s6, [#allocation4]
    $region49: #{tpu_custom_call.1} parent=1 // pred_fallthru
      _
    // Predicated region
    $region50: #{tpu_custom_call.1} parent=1 // pred_check
      _
    $region51: #{tpu_custom_call.1} parent=1 // pred_check_branch
      %136 = sbr.rel (0) target = $region53
    $region52: #{tpu_custom_call.1} parent=1 // pred_region
      %137 = dma.done [#allocation4], 384
    $region53: #{tpu_custom_call.1} parent=1 // pred_fallthru
      _
    %138 = vsyncpa [#allocation3], 1
    %139 = vsyncpa [#allocation6], 1
    %140 = vsyncpa [#allocation9], 1
    %141 = vsyncpa [#allocation4], 1

</llo_original>
